<compile_context>
chip_gen: v5e
topology: v5e:2x2
jax: 0.10.0
libtpu: 0.0.40
codegen_flags: <defaults>
</compile_context>

<pallas_src>
import jax
import jax.numpy as jnp
from jax import lax
from jax.experimental import pallas as pl
from jax.experimental.pallas import tpu as pltpu


# ----------------------------- Pallas kernel ------------------------------

def _attention_fused_kernel(g_ref, gflat_ref, w_ref, b_ref, gout_ref, ats_ref):
    """Fused Linear(n -> feats*feats)+ReLU producing ats, then g @ ats.

    g_ref    : (n_window, feats)     VMEM
    gflat_ref: (1, n_window*feats)   VMEM (same data as g, flattened row)
    w_ref    : (feats*feats, n)      VMEM (PyTorch Linear weight, out x in)
    b_ref    : (feats, feats)        VMEM (bias; row r = bias for ats row r)
    gout_ref : (n_window, feats)     VMEM output
    ats_ref  : (feats, feats)        VMEM output
    """
    feats = ats_ref.shape[0]
    gflat = gflat_ref[...]                                  # (1, n)

    # Linear + ReLU, blocked over output rows of ats: each row is computed and
    # stored straight into its final (r, :) slot. feats is small and static, so
    # a plain unrolled Python loop is fine (static ref slices only).
    for r in range(feats):
        w_rows = w_ref[r * feats:(r + 1) * feats, :]        # (feats, n), sublane-aligned
        acc = lax.dot_general(                              # (1,n) . (feats,n)^T -> (1,feats)
            gflat, w_rows,
            dimension_numbers=(((1,), (1,)), ((), ())),     # contract on W's dim 1: no HBM W.T
            preferred_element_type=jnp.float32)
        acc = acc + b_ref[r:r + 1, :]
        ats_ref[r:r + 1, :] = jnp.maximum(acc, 0.0)

    # Second matmul reuses the just-written ats tile directly from VMEM.
    gout_ref[...] = jnp.dot(g_ref[...], ats_ref[...],
                            preferred_element_type=jnp.float32)


# ------------------------------- wrapper ----------------------------------

_VMEM_SPEC = pl.BlockSpec(memory_space=pltpu.MemorySpace.VMEM)


def attention_forward(g, W, b):
    """Pallas implementation of Attention.forward.

    g: (n_window, feats) float32
    W: (feats*feats, n)  float32   (PyTorch Linear weight, out x in)
    b: (feats*feats,)    float32
    returns (g_out, ats) with shapes (n_window, feats), (feats, feats)
    """
    n_window, feats = g.shape
    n = n_window * feats
    ff = feats * feats
    assert W.shape == (ff, n)
    assert b.shape == (ff,)

    # Cheap metadata reshapes only (no weight transpose, no extra HBM traffic).
    g_flat = g.reshape(1, n)
    b2 = b.reshape(feats, feats)

    g_out, ats = pl.pallas_call(
        _attention_fused_kernel,
        out_shape=(jax.ShapeDtypeStruct((n_window, feats), jnp.float32),
                   jax.ShapeDtypeStruct((feats, feats), jnp.float32)),
        in_specs=[_VMEM_SPEC, _VMEM_SPEC, _VMEM_SPEC, _VMEM_SPEC],
        out_specs=(_VMEM_SPEC, _VMEM_SPEC),
    )(g, g_flat, W, b2)
    return g_out, ats


def attention_forward_ref(g, W, b):
    """Pure-JAX reference mirroring the PyTorch module."""
    feats = g.shape[1]
    ats = jnp.maximum(g.reshape(-1) @ W.T + b, 0.0).reshape(feats, feats)
    return g @ ats, ats


# --------------------------------- main ------------------------------------

if __name__ == "__main__":
    feats = 8
    n_window = 5
    n = feats * n_window

    key = jax.random.PRNGKey(0)
    k_g, k_w, k_b = jax.random.split(key, 3)

    # Deterministic synthetic parameters (shapes from nn.Linear(n, feats*feats)).
    g = jax.random.normal(k_g, (n_window, feats), dtype=jnp.float32)
    W = jax.random.normal(k_w, (feats * feats, n), dtype=jnp.float32) * (1.0 / jnp.sqrt(n))
    b = jax.random.normal(k_b, (feats * feats,), dtype=jnp.float32) * 0.01

    g_out, ats = attention_forward(g, W, b)
    g_out = jax.block_until_ready(g_out)
    ats = jax.block_until_ready(ats)

    g_ref, ats_ref = attention_forward_ref(g, W, b)
    assert jnp.allclose(g_out, g_ref, atol=1e-4, rtol=1e-4)
    assert jnp.allclose(ats, ats_ref, atol=1e-4, rtol=1e-4)

    print("KERNEL_OK")
</pallas_src>

<mosaic_0001>
module attributes {stable_mosaic.version = 11 : i64} {
  func.func @_attention_fused_kernel(%arg0: memref<5x8xf32, #tpu.memory_space<vmem>>, %arg1: memref<1x40xf32, #tpu.memory_space<vmem>>, %arg2: memref<64x40xf32, #tpu.memory_space<vmem>>, %arg3: memref<8x8xf32, #tpu.memory_space<vmem>>, %arg4: memref<5x8xf32, #tpu.memory_space<vmem>>, %arg5: memref<8x8xf32, #tpu.memory_space<vmem>>) attributes {dimension_semantics = [], scalar_prefetch = 0 : i64, scratch_operands = 0 : i64, tpu.core_type = #tpu.core_type<tc>} {
    %c0 = arith.constant 0 : index
    %c0_0 = arith.constant 0 : index
    %0 = vector.load %arg1[%c0, %c0_0] : memref<1x40xf32, #tpu.memory_space<vmem>>, vector<1x40xf32>
    %c0_1 = arith.constant 0 : index
    %c0_2 = arith.constant 0 : index
    %1 = vector.load %arg2[%c0_1, %c0_2] : memref<64x40xf32, #tpu.memory_space<vmem>>, vector<8x40xf32>
    %cst = arith.constant dense<0.000000e+00> : vector<1x8xf32>
    %2 = tpu.matmul %0, %1, %cst {dimension_numbers = #tpu.dot_dimension_numbers<[1], [1], [0], [0], [0, 0, 1, 0], [], []>} : vector<1x40xf32>, vector<8x40xf32>, vector<1x8xf32> -> vector<1x8xf32>
    %c0_3 = arith.constant 0 : index
    %c0_4 = arith.constant 0 : index
    %3 = vector.load %arg3[%c0_3, %c0_4] : memref<8x8xf32, #tpu.memory_space<vmem>>, vector<1x8xf32>
    %4 = arith.addf %2, %3 : vector<1x8xf32>
    %cst_5 = arith.constant 0.000000e+00 : f32
    %5 = vector.broadcast %cst_5 : f32 to vector<1x8xf32>
    %6 = arith.maximumf %4, %5 : vector<1x8xf32>
    %c0_6 = arith.constant 0 : index
    %c0_7 = arith.constant 0 : index
    %7 = vector.load %arg5[%c0_6, %c0_7] : memref<8x8xf32, #tpu.memory_space<vmem>>, vector<1x8xf32>
    tpu.vector_store %arg5[%c0_6, %c0_7], %6 {strides = array<i32>} : memref<8x8xf32, #tpu.memory_space<vmem>>, vector<1x8xf32>,
    %c8 = arith.constant 8 : index
    %c0_8 = arith.constant 0 : index
    %8 = vector.load %arg2[%c8, %c0_8] : memref<64x40xf32, #tpu.memory_space<vmem>>, vector<8x40xf32>
    %cst_9 = arith.constant dense<0.000000e+00> : vector<1x8xf32>
    %9 = tpu.matmul %0, %8, %cst_9 {dimension_numbers = #tpu.dot_dimension_numbers<[1], [1], [0], [0], [0, 0, 1, 0], [], []>} : vector<1x40xf32>, vector<8x40xf32>, vector<1x8xf32> -> vector<1x8xf32>
    %c1 = arith.constant 1 : index
    %c0_10 = arith.constant 0 : index
    %10 = vector.load %arg3[%c1, %c0_10] : memref<8x8xf32, #tpu.memory_space<vmem>>, vector<1x8xf32>
    %11 = arith.addf %9, %10 : vector<1x8xf32>
    %cst_11 = arith.constant 0.000000e+00 : f32
    %12 = vector.broadcast %cst_11 : f32 to vector<1x8xf32>
    %13 = arith.maximumf %11, %12 : vector<1x8xf32>
    %c1_12 = arith.constant 1 : index
    %c0_13 = arith.constant 0 : index
    %14 = vector.load %arg5[%c1_12, %c0_13] : memref<8x8xf32, #tpu.memory_space<vmem>>, vector<1x8xf32>
    tpu.vector_store %arg5[%c1_12, %c0_13], %13 {strides = array<i32>} : memref<8x8xf32, #tpu.memory_space<vmem>>, vector<1x8xf32>,
    %c16 = arith.constant 16 : index
    %c0_14 = arith.constant 0 : index
    %15 = vector.load %arg2[%c16, %c0_14] : memref<64x40xf32, #tpu.memory_space<vmem>>, vector<8x40xf32>
    %cst_15 = arith.constant dense<0.000000e+00> : vector<1x8xf32>
    %16 = tpu.matmul %0, %15, %cst_15 {dimension_numbers = #tpu.dot_dimension_numbers<[1], [1], [0], [0], [0, 0, 1, 0], [], []>} : vector<1x40xf32>, vector<8x40xf32>, vector<1x8xf32> -> vector<1x8xf32>
    %c2 = arith.constant 2 : index
    %c0_16 = arith.constant 0 : index
    %17 = vector.load %arg3[%c2, %c0_16] : memref<8x8xf32, #tpu.memory_space<vmem>>, vector<1x8xf32>
    %18 = arith.addf %16, %17 : vector<1x8xf32>
    %cst_17 = arith.constant 0.000000e+00 : f32
    %19 = vector.broadcast %cst_17 : f32 to vector<1x8xf32>
    %20 = arith.maximumf %18, %19 : vector<1x8xf32>
    %c2_18 = arith.constant 2 : index
    %c0_19 = arith.constant 0 : index
    %21 = vector.load %arg5[%c2_18, %c0_19] : memref<8x8xf32, #tpu.memory_space<vmem>>, vector<1x8xf32>
    tpu.vector_store %arg5[%c2_18, %c0_19], %20 {strides = array<i32>} : memref<8x8xf32, #tpu.memory_space<vmem>>, vector<1x8xf32>,
    %c24 = arith.constant 24 : index
    %c0_20 = arith.constant 0 : index
    %22 = vector.load %arg2[%c24, %c0_20] : memref<64x40xf32, #tpu.memory_space<vmem>>, vector<8x40xf32>
    %cst_21 = arith.constant dense<0.000000e+00> : vector<1x8xf32>
    %23 = tpu.matmul %0, %22, %cst_21 {dimension_numbers = #tpu.dot_dimension_numbers<[1], [1], [0], [0], [0, 0, 1, 0], [], []>} : vector<1x40xf32>, vector<8x40xf32>, vector<1x8xf32> -> vector<1x8xf32>
    %c3 = arith.constant 3 : index
    %c0_22 = arith.constant 0 : index
    %24 = vector.load %arg3[%c3, %c0_22] : memref<8x8xf32, #tpu.memory_space<vmem>>, vector<1x8xf32>
    %25 = arith.addf %23, %24 : vector<1x8xf32>
    %cst_23 = arith.constant 0.000000e+00 : f32
    %26 = vector.broadcast %cst_23 : f32 to vector<1x8xf32>
    %27 = arith.maximumf %25, %26 : vector<1x8xf32>
    %c3_24 = arith.constant 3 : index
    %c0_25 = arith.constant 0 : index
    %28 = vector.load %arg5[%c3_24, %c0_25] : memref<8x8xf32, #tpu.memory_space<vmem>>, vector<1x8xf32>
    tpu.vector_store %arg5[%c3_24, %c0_25], %27 {strides = array<i32>} : memref<8x8xf32, #tpu.memory_space<vmem>>, vector<1x8xf32>,
    %c32 = arith.constant 32 : index
    %c0_26 = arith.constant 0 : index
    %29 = vector.load %arg2[%c32, %c0_26] : memref<64x40xf32, #tpu.memory_space<vmem>>, vector<8x40xf32>
    %cst_27 = arith.constant dense<0.000000e+00> : vector<1x8xf32>
    %30 = tpu.matmul %0, %29, %cst_27 {dimension_numbers = #tpu.dot_dimension_numbers<[1], [1], [0], [0], [0, 0, 1, 0], [], []>} : vector<1x40xf32>, vector<8x40xf32>, vector<1x8xf32> -> vector<1x8xf32>
    %c4 = arith.constant 4 : index
    %c0_28 = arith.constant 0 : index
    %31 = vector.load %arg3[%c4, %c0_28] : memref<8x8xf32, #tpu.memory_space<vmem>>, vector<1x8xf32>
    %32 = arith.addf %30, %31 : vector<1x8xf32>
    %cst_29 = arith.constant 0.000000e+00 : f32
    %33 = vector.broadcast %cst_29 : f32 to vector<1x8xf32>
    %34 = arith.maximumf %32, %33 : vector<1x8xf32>
    %c4_30 = arith.constant 4 : index
    %c0_31 = arith.constant 0 : index
    %35 = vector.load %arg5[%c4_30, %c0_31] : memref<8x8xf32, #tpu.memory_space<vmem>>, vector<1x8xf32>
    tpu.vector_store %arg5[%c4_30, %c0_31], %34 {strides = array<i32>} : memref<8x8xf32, #tpu.memory_space<vmem>>, vector<1x8xf32>,
    %c40 = arith.constant 40 : index
    %c0_32 = arith.constant 0 : index
    %36 = vector.load %arg2[%c40, %c0_32] : memref<64x40xf32, #tpu.memory_space<vmem>>, vector<8x40xf32>
    %cst_33 = arith.constant dense<0.000000e+00> : vector<1x8xf32>
    %37 = tpu.matmul %0, %36, %cst_33 {dimension_numbers = #tpu.dot_dimension_numbers<[1], [1], [0], [0], [0, 0, 1, 0], [], []>} : vector<1x40xf32>, vector<8x40xf32>, vector<1x8xf32> -> vector<1x8xf32>
    %c5 = arith.constant 5 : index
    %c0_34 = arith.constant 0 : index
    %38 = vector.load %arg3[%c5, %c0_34] : memref<8x8xf32, #tpu.memory_space<vmem>>, vector<1x8xf32>
    %39 = arith.addf %37, %38 : vector<1x8xf32>
    %cst_35 = arith.constant 0.000000e+00 : f32
    %40 = vector.broadcast %cst_35 : f32 to vector<1x8xf32>
    %41 = arith.maximumf %39, %40 : vector<1x8xf32>
    %c5_36 = arith.constant 5 : index
    %c0_37 = arith.constant 0 : index
    %42 = vector.load %arg5[%c5_36, %c0_37] : memref<8x8xf32, #tpu.memory_space<vmem>>, vector<1x8xf32>
    tpu.vector_store %arg5[%c5_36, %c0_37], %41 {strides = array<i32>} : memref<8x8xf32, #tpu.memory_space<vmem>>, vector<1x8xf32>,
    %c48 = arith.constant 48 : index
    %c0_38 = arith.constant 0 : index
    %43 = vector.load %arg2[%c48, %c0_38] : memref<64x40xf32, #tpu.memory_space<vmem>>, vector<8x40xf32>
    %cst_39 = arith.constant dense<0.000000e+00> : vector<1x8xf32>
    %44 = tpu.matmul %0, %43, %cst_39 {dimension_numbers = #tpu.dot_dimension_numbers<[1], [1], [0], [0], [0, 0, 1, 0], [], []>} : vector<1x40xf32>, vector<8x40xf32>, vector<1x8xf32> -> vector<1x8xf32>
    %c6 = arith.constant 6 : index
    %c0_40 = arith.constant 0 : index
    %45 = vector.load %arg3[%c6, %c0_40] : memref<8x8xf32, #tpu.memory_space<vmem>>, vector<1x8xf32>
    %46 = arith.addf %44, %45 : vector<1x8xf32>
    %cst_41 = arith.constant 0.000000e+00 : f32
    %47 = vector.broadcast %cst_41 : f32 to vector<1x8xf32>
    %48 = arith.maximumf %46, %47 : vector<1x8xf32>
    %c6_42 = arith.constant 6 : index
    %c0_43 = arith.constant 0 : index
    %49 = vector.load %arg5[%c6_42, %c0_43] : memref<8x8xf32, #tpu.memory_space<vmem>>, vector<1x8xf32>
    tpu.vector_store %arg5[%c6_42, %c0_43], %48 {strides = array<i32>} : memref<8x8xf32, #tpu.memory_space<vmem>>, vector<1x8xf32>,
    %c56 = arith.constant 56 : index
    %c0_44 = arith.constant 0 : index
    %50 = vector.load %arg2[%c56, %c0_44] : memref<64x40xf32, #tpu.memory_space<vmem>>, vector<8x40xf32>
    %cst_45 = arith.constant dense<0.000000e+00> : vector<1x8xf32>
    %51 = tpu.matmul %0, %50, %cst_45 {dimension_numbers = #tpu.dot_dimension_numbers<[1], [1], [0], [0], [0, 0, 1, 0], [], []>} : vector<1x40xf32>, vector<8x40xf32>, vector<1x8xf32> -> vector<1x8xf32>
    %c7 = arith.constant 7 : index
    %c0_46 = arith.constant 0 : index
    %52 = vector.load %arg3[%c7, %c0_46] : memref<8x8xf32, #tpu.memory_space<vmem>>, vector<1x8xf32>
    %53 = arith.addf %51, %52 : vector<1x8xf32>
    %cst_47 = arith.constant 0.000000e+00 : f32
    %54 = vector.broadcast %cst_47 : f32 to vector<1x8xf32>
    %55 = arith.maximumf %53, %54 : vector<1x8xf32>
    %c7_48 = arith.constant 7 : index
    %c0_49 = arith.constant 0 : index
    %56 = vector.load %arg5[%c7_48, %c0_49] : memref<8x8xf32, #tpu.memory_space<vmem>>, vector<1x8xf32>
    tpu.vector_store %arg5[%c7_48, %c0_49], %55 {strides = array<i32>} : memref<8x8xf32, #tpu.memory_space<vmem>>, vector<1x8xf32>,
    %c0_50 = arith.constant 0 : index
    %c0_51 = arith.constant 0 : index
    %57 = vector.load %arg0[%c0_50, %c0_51] : memref<5x8xf32, #tpu.memory_space<vmem>>, vector<5x8xf32>
    %c0_52 = arith.constant 0 : index
    %c0_53 = arith.constant 0 : index
    %58 = vector.load %arg5[%c0_52, %c0_53] : memref<8x8xf32, #tpu.memory_space<vmem>>, vector<8x8xf32>
    %cst_54 = arith.constant dense<0.000000e+00> : vector<5x8xf32>
    %59 = tpu.matmul %57, %58, %cst_54 {dimension_numbers = #tpu.dot_dimension_numbers<[1], [0], [0], [1], [0, 0, 1, 1], [], []>} : vector<5x8xf32>, vector<8x8xf32>, vector<5x8xf32> -> vector<5x8xf32>
    %c0_55 = arith.constant 0 : index
    %c0_56 = arith.constant 0 : index
    %60 = vector.load %arg4[%c0_55, %c0_56] : memref<5x8xf32, #tpu.memory_space<vmem>>, vector<5x8xf32>
    tpu.vector_store %arg4[%c0_55, %c0_56], %59 {strides = array<i32>} : memref<5x8xf32, #tpu.memory_space<vmem>>, vector<5x8xf32>,
    return
  }
}

</mosaic_0001>

<llo_original>
// kernel: tpu_custom_call.1
$region0: #{tpu_custom_call.1}
  #allocation0 [shape = 'u32[]', space=smem, size = 0x4, offset = 0x4, fixed_abs, tag = 'smem constant byte address 0x4 - core index']
  #allocation1 [shape = 'u32[72,128]{1,0:T(1,128)}', space=vmem, size = 0x9000, scoped, tag = 'internal scratch']
  %s0 = inlined_call_operand.vmem [shape: f32[5,8], index: 0, kind: input, shape index: {}]
  %s1 = inlined_call_operand.vmem [shape: f32[1,40], index: 1, kind: input, shape index: {}]
  %s2 = inlined_call_operand.vmem [shape: f32[64,40], index: 2, kind: input, shape index: {}]
  %s3 = inlined_call_operand.vmem [shape: f32[8,8], index: 3, kind: input, shape index: {}]
  %s4 = inlined_call_operand.hbm [shape: f32[5,8], index: 4, kind: output, shape index: {0}]
  %s5 = inlined_call_operand.hbm [shape: f32[8,8], index: 5, kind: output, shape index: {1}]
  %6 = xla_tuple %s4, %s5
  %s7 = sld [smem:[#allocation0]]
  $region34: #{tpu_custom_call.1} parent=0
    _
  %s9 = ssub.s32 1, %s7
  %s10 = scalar_select 0, %s9, %s7
  $region1: #{tpu_custom_call.1} parent=0
    #allocation2 [shape = 'u8[4096]{0}', space=vmem, size = 0x1000, scoped, tag = 'output window, operand 0, single buffered']
    #allocation3 [shape = 's32[1]{0}', space=sflag, size = 0x4, scoped, tag = 'scoped memory for tpu_custom_call.1']
    #allocation4 [shape = 'u8[4096]{0}', space=vmem, size = 0x1000, scoped, tag = 'output window, operand 1, single buffered']
    #allocation5 [shape = 's32[1]{0}', space=sflag, size = 0x4, scoped, tag = 'scoped memory for tpu_custom_call.1']
    %11 = vsyncpa [#allocation3], 0
    %12 = vsyncpa [#allocation5], 0
    // Predicated region
    $region2: #{tpu_custom_call.1} parent=1 // pred_check
      _
    $region3: #{tpu_custom_call.1} parent=1 // pred_check_branch
      %14 = sbr.rel (0) target = $region5
    $region4: #{tpu_custom_call.1} parent=1 // pred_region
      _
    $region5: #{tpu_custom_call.1} parent=1 // pred_fallthru
      _
    // Predicated region
    $region6: #{tpu_custom_call.1} parent=1 // pred_check
      _
    $region7: #{tpu_custom_call.1} parent=1 // pred_check_branch
      %16 = sbr.rel (0) target = $region9
    $region8: #{tpu_custom_call.1} parent=1 // pred_region
      _
    $region9: #{tpu_custom_call.1} parent=1 // pred_fallthru
      _
    // Predicated region
    $region10: #{tpu_custom_call.1} parent=1 // pred_check
      _
    $region11: #{tpu_custom_call.1} parent=1 // pred_check_branch
      %18 = sbr.rel (0) target = $region13
    $region12: #{tpu_custom_call.1} parent=1 // pred_region
      _
    $region13: #{tpu_custom_call.1} parent=1 // pred_fallthru
      _
    // Predicated region
    $region14: #{tpu_custom_call.1} parent=1 // pred_check
      _
    $region15: #{tpu_custom_call.1} parent=1 // pred_check_branch
      %20 = sbr.rel (0) target = $region17
    $region16: #{tpu_custom_call.1} parent=1 // pred_region
      _
    $region17: #{tpu_custom_call.1} parent=1 // pred_fallthru
      _
    %v21 = vld [vmem:[%s1] sm:$0x1]
    %v22 = vld [vmem:[%s2] sm:$0xff]
    %v23 = vld [vmem:[%s3] sm:$0x1]
    %vm24 = vcmask 326656
    %v26 = vsel %vm24, %v21, 0
    %v29 = vsel %vm24, %v22, 0
    %31 = vmatpush.xpose.msra.mxu0 0.0
    %32 = vmatpush.xpose.msra.mxu0 0.0
    %33 = vmatpush.xpose.msra.mxu0 0.0
    %34 = vmatpush.xpose.msra.mxu0 0.0
    %35 = vmatpush.xpose.msra.mxu0 0.0
    %36 = vmatpush.xpose.msra.mxu0 0.0
    %37 = vmatpush.xpose.msra.mxu0 0.0
    %38 = vmatpush.xpose.msra.mxu0 0.0
    %39 = vmatpush.xpose.msra.mxu0 0.0
    %40 = vmatpush.xpose.msra.mxu0 0.0
    %41 = vmatpush.xpose.msra.mxu0 0.0
    %42 = vmatpush.xpose.msra.mxu0 0.0
    %43 = vmatpush.xpose.msra.mxu0 0.0
    %44 = vmatpush.xpose.msra.mxu0 0.0
    %45 = vmatpush.xpose.msra.mxu0 0.0
    %46 = vmatpush.xpose.msra.mxu0 %v29
    %47 = vmatmul.f32.gmra.mxu0 %v26
    %v48 = vpop.f32.mrf.mxu0
    %v49 = vadd.f32 %v23, %v48
    %50 = vdwg.mxu0
    %v51 = vmax.f32 %v49, 0.0
    %vm52 = vcmask 57344
    %53 = vst.msk [vmem:[#allocation4] sm:$0x1] %vm52, %v51
    %v54 = vld [vmem:[%s2 + $0x8] sm:$0xff]
    %v55 = vld [vmem:[%s3 + $0x1] sm:$0x1]
    %v57 = vsel %vm24, %v54, 0
    %59 = vmatpush.xpose.msra.mxu0 0.0
    %60 = vmatpush.xpose.msra.mxu0 0.0
    %61 = vmatpush.xpose.msra.mxu0 0.0
    %62 = vmatpush.xpose.msra.mxu0 0.0
    %63 = vmatpush.xpose.msra.mxu0 0.0
    %64 = vmatpush.xpose.msra.mxu0 0.0
    %65 = vmatpush.xpose.msra.mxu0 0.0
    %66 = vmatpush.xpose.msra.mxu0 0.0
    %67 = vmatpush.xpose.msra.mxu0 0.0
    %68 = vmatpush.xpose.msra.mxu0 0.0
    %69 = vmatpush.xpose.msra.mxu0 0.0
    %70 = vmatpush.xpose.msra.mxu0 0.0
    %71 = vmatpush.xpose.msra.mxu0 0.0
    %72 = vmatpush.xpose.msra.mxu0 0.0
    %73 = vmatpush.xpose.msra.mxu0 0.0
    %74 = vmatpush.xpose.msra.mxu0 %v57
    %75 = vmatmul.f32.gmra.mxu0 %v26
    %v76 = vpop.f32.mrf.mxu0
    %v77 = vadd.f32 %v55, %v76
    %78 = vdwg.mxu0
    %v79 = vmax.f32 %v77, 0.0
    %80 = vst.msk [vmem:[#allocation4 + $0x1] sm:$0x1] %vm52, %v79
    %v81 = vld [vmem:[%s2 + $0x10] sm:$0xff]
    %v82 = vld [vmem:[%s3 + $0x2] sm:$0x1]
    %v84 = vsel %vm24, %v81, 0
    %86 = vmatpush.xpose.msra.mxu0 0.0
    %87 = vmatpush.xpose.msra.mxu0 0.0
    %88 = vmatpush.xpose.msra.mxu0 0.0
    %89 = vmatpush.xpose.msra.mxu0 0.0
    %90 = vmatpush.xpose.msra.mxu0 0.0
    %91 = vmatpush.xpose.msra.mxu0 0.0
    %92 = vmatpush.xpose.msra.mxu0 0.0
    %93 = vmatpush.xpose.msra.mxu0 0.0
    %94 = vmatpush.xpose.msra.mxu0 0.0
    %95 = vmatpush.xpose.msra.mxu0 0.0
    %96 = vmatpush.xpose.msra.mxu0 0.0
    %97 = vmatpush.xpose.msra.mxu0 0.0
    %98 = vmatpush.xpose.msra.mxu0 0.0
    %99 = vmatpush.xpose.msra.mxu0 0.0
    %100 = vmatpush.xpose.msra.mxu0 0.0
    %101 = vmatpush.xpose.msra.mxu0 %v84
    %102 = vmatmul.f32.gmra.mxu0 %v26
    %v103 = vpop.f32.mrf.mxu0
    %v104 = vadd.f32 %v82, %v103
    %105 = vdwg.mxu0
    %v106 = vmax.f32 %v104, 0.0
    %107 = vst.msk [vmem:[#allocation4 + $0x2] sm:$0x1] %vm52, %v106
    %v108 = vld [vmem:[%s2 + $0x18] sm:$0xff]
    %v109 = vld [vmem:[%s3 + $0x3] sm:$0x1]
    %v111 = vsel %vm24, %v108, 0
    %113 = vmatpush.xpose.msra.mxu0 0.0
    %114 = vmatpush.xpose.msra.mxu0 0.0
    %115 = vmatpush.xpose.msra.mxu0 0.0
    %116 = vmatpush.xpose.msra.mxu0 0.0
    %117 = vmatpush.xpose.msra.mxu0 0.0
    %118 = vmatpush.xpose.msra.mxu0 0.0
    %119 = vmatpush.xpose.msra.mxu0 0.0
    %120 = vmatpush.xpose.msra.mxu0 0.0
    %121 = vmatpush.xpose.msra.mxu0 0.0
    %122 = vmatpush.xpose.msra.mxu0 0.0
    %123 = vmatpush.xpose.msra.mxu0 0.0
    %124 = vmatpush.xpose.msra.mxu0 0.0
    %125 = vmatpush.xpose.msra.mxu0 0.0
    %126 = vmatpush.xpose.msra.mxu0 0.0
    %127 = vmatpush.xpose.msra.mxu0 0.0
    %128 = vmatpush.xpose.msra.mxu0 %v111
    %129 = vmatmul.f32.gmra.mxu0 %v26
    %v130 = vpop.f32.mrf.mxu0
    %v131 = vadd.f32 %v109, %v130
    %132 = vdwg.mxu0
    %v133 = vmax.f32 %v131, 0.0
    %134 = vst.msk [vmem:[#allocation4 + $0x3] sm:$0x1] %vm52, %v133
    %v135 = vld [vmem:[%s2 + $0x20] sm:$0xff]
    %v136 = vld [vmem:[%s3 + $0x4] sm:$0x1]
    %v138 = vsel %vm24, %v135, 0
    %140 = vmatpush.xpose.msra.mxu0 0.0
    %141 = vmatpush.xpose.msra.mxu0 0.0
    %142 = vmatpush.xpose.msra.mxu0 0.0
    %143 = vmatpush.xpose.msra.mxu0 0.0
    %144 = vmatpush.xpose.msra.mxu0 0.0
    %145 = vmatpush.xpose.msra.mxu0 0.0
    %146 = vmatpush.xpose.msra.mxu0 0.0
    %147 = vmatpush.xpose.msra.mxu0 0.0
    %148 = vmatpush.xpose.msra.mxu0 0.0
    %149 = vmatpush.xpose.msra.mxu0 0.0
    %150 = vmatpush.xpose.msra.mxu0 0.0
    %151 = vmatpush.xpose.msra.mxu0 0.0
    %152 = vmatpush.xpose.msra.mxu0 0.0
    %153 = vmatpush.xpose.msra.mxu0 0.0
    %154 = vmatpush.xpose.msra.mxu0 0.0
    %155 = vmatpush.xpose.msra.mxu0 %v138
    %156 = vmatmul.f32.gmra.mxu0 %v26
    %v157 = vpop.f32.mrf.mxu0
    %v158 = vadd.f32 %v136, %v157
    %159 = vdwg.mxu0
    %v160 = vmax.f32 %v158, 0.0
    %161 = vst.msk [vmem:[#allocation4 + $0x4] sm:$0x1] %vm52, %v160
    %v162 = vld [vmem:[%s2 + $0x28] sm:$0xff]
    %v163 = vld [vmem:[%s3 + $0x5] sm:$0x1]
    %v165 = vsel %vm24, %v162, 0
    %167 = vmatpush.xpose.msra.mxu0 0.0
    %168 = vmatpush.xpose.msra.mxu0 0.0
    %169 = vmatpush.xpose.msra.mxu0 0.0
    %170 = vmatpush.xpose.msra.mxu0 0.0
    %171 = vmatpush.xpose.msra.mxu0 0.0
    %172 = vmatpush.xpose.msra.mxu0 0.0
    %173 = vmatpush.xpose.msra.mxu0 0.0
    %174 = vmatpush.xpose.msra.mxu0 0.0
    %175 = vmatpush.xpose.msra.mxu0 0.0
    %176 = vmatpush.xpose.msra.mxu0 0.0
    %177 = vmatpush.xpose.msra.mxu0 0.0
    %178 = vmatpush.xpose.msra.mxu0 0.0
    %179 = vmatpush.xpose.msra.mxu0 0.0
    %180 = vmatpush.xpose.msra.mxu0 0.0
    %181 = vmatpush.xpose.msra.mxu0 0.0
    %182 = vmatpush.xpose.msra.mxu0 %v165
    %183 = vmatmul.f32.gmra.mxu0 %v26
    %v184 = vpop.f32.mrf.mxu0
    %v185 = vadd.f32 %v163, %v184
    %186 = vdwg.mxu0
    %v187 = vmax.f32 %v185, 0.0
    %188 = vst.msk [vmem:[#allocation4 + $0x5] sm:$0x1] %vm52, %v187
    %v189 = vld [vmem:[%s2 + $0x30] sm:$0xff]
    %v190 = vld [vmem:[%s3 + $0x6] sm:$0x1]
    %v192 = vsel %vm24, %v189, 0
    %194 = vmatpush.xpose.msra.mxu0 0.0
    %195 = vmatpush.xpose.msra.mxu0 0.0
    %196 = vmatpush.xpose.msra.mxu0 0.0
    %197 = vmatpush.xpose.msra.mxu0 0.0
    %198 = vmatpush.xpose.msra.mxu0 0.0
    %199 = vmatpush.xpose.msra.mxu0 0.0
    %200 = vmatpush.xpose.msra.mxu0 0.0
    %201 = vmatpush.xpose.msra.mxu0 0.0
    %202 = vmatpush.xpose.msra.mxu0 0.0
    %203 = vmatpush.xpose.msra.mxu0 0.0
    %204 = vmatpush.xpose.msra.mxu0 0.0
    %205 = vmatpush.xpose.msra.mxu0 0.0
    %206 = vmatpush.xpose.msra.mxu0 0.0
    %207 = vmatpush.xpose.msra.mxu0 0.0
    %208 = vmatpush.xpose.msra.mxu0 0.0
    %209 = vmatpush.xpose.msra.mxu0 %v192
    %210 = vmatmul.f32.gmra.mxu0 %v26
    %v211 = vpop.f32.mrf.mxu0
    %v212 = vadd.f32 %v190, %v211
    %213 = vdwg.mxu0
    %v214 = vmax.f32 %v212, 0.0
    %215 = vst.msk [vmem:[#allocation4 + $0x6] sm:$0x1] %vm52, %v214
    %v216 = vld [vmem:[%s2 + $0x38] sm:$0xff]
    %v217 = vld [vmem:[%s3 + $0x7] sm:$0x1]
    %v219 = vsel %vm24, %v216, 0
    %221 = vmatpush.xpose.msra.mxu0 0.0
    %222 = vmatpush.xpose.msra.mxu0 0.0
    %223 = vmatpush.xpose.msra.mxu0 0.0
    %224 = vmatpush.xpose.msra.mxu0 0.0
    %225 = vmatpush.xpose.msra.mxu0 0.0
    %226 = vmatpush.xpose.msra.mxu0 0.0
    %227 = vmatpush.xpose.msra.mxu0 0.0
    %228 = vmatpush.xpose.msra.mxu0 0.0
    %229 = vmatpush.xpose.msra.mxu0 0.0
    %230 = vmatpush.xpose.msra.mxu0 0.0
    %231 = vmatpush.xpose.msra.mxu0 0.0
    %232 = vmatpush.xpose.msra.mxu0 0.0
    %233 = vmatpush.xpose.msra.mxu0 0.0
    %234 = vmatpush.xpose.msra.mxu0 0.0
    %235 = vmatpush.xpose.msra.mxu0 0.0
    %236 = vmatpush.xpose.msra.mxu0 %v219
    %237 = vmatmul.f32.gmra.mxu0 %v26
    %v238 = vpop.f32.mrf.mxu0
    %v239 = vadd.f32 %v217, %v238
    %240 = vdwg.mxu0
    %v241 = vmax.f32 %v239, 0.0
    %242 = vst.msk [vmem:[#allocation4 + $0x7] sm:$0x1] %vm52, %v241
    %v243 = vld [vmem:[%s0] sm:$0x1f]
    %v244 = vld [vmem:[#allocation4] sm:$0xff]
    %vm245 = vcmask 64512
    %v247 = vsel %vm245, %v243, 0
    %249 = vmatpush.msra.mxu0 0.0
    %250 = vmatpush.msra.mxu0 0.0
    %251 = vmatpush.msra.mxu0 0.0
    %252 = vmatpush.msra.mxu0 0.0
    %253 = vmatpush.msra.mxu0 0.0
    %254 = vmatpush.msra.mxu0 0.0
    %255 = vmatpush.msra.mxu0 0.0
    %256 = vmatpush.msra.mxu0 0.0
    %257 = vmatpush.msra.mxu0 0.0
    %258 = vmatpush.msra.mxu0 0.0
    %259 = vmatpush.msra.mxu0 0.0
    %260 = vmatpush.msra.mxu0 0.0
    %261 = vmatpush.msra.mxu0 0.0
    %262 = vmatpush.msra.mxu0 0.0
    %263 = vmatpush.msra.mxu0 0.0
    %264 = vmatpush.msra.mxu0 %v244
    %265 = vmatmul.f32.gmra.mxu0 %v247
    %v266 = vpop.f32.mrf.mxu0
    %v267 = vadd.f32 0.0, %v266
    %268 = vdwg.mxu0
    %vm269 = vcmask 61440
    %270 = vst.msk [vmem:[#allocation2] sm:$0x1f] %vm269, %v267
    // Predicated region
    $region18: #{tpu_custom_call.1} parent=1 // pred_check
      _
    $region19: #{tpu_custom_call.1} parent=1 // pred_check_branch
      %272 = sbr.rel (0) target = $region21
    $region20: #{tpu_custom_call.1} parent=1 // pred_region
      %274 = vsyncadd [#allocation3], 0
      %s276 = sshll.u32 [#allocation2], 4
      %s277 = int_to_ptr.vmem [resolvable:$true] %s276
      %s278 = sshll.u32 %s4, 4
      %s279 = int_to_ptr.hbm [resolvable:$true] %s278
      %281 = dma.vmem_to_hbm [thread:$0]  %s277, 128, %s279, [#allocation3]
    $region21: #{tpu_custom_call.1} parent=1 // pred_fallthru
      _
    // Predicated region
    $region22: #{tpu_custom_call.1} parent=1 // pred_check
      _
    $region23: #{tpu_custom_call.1} parent=1 // pred_check_branch
      %283 = sbr.rel (0) target = $region25
    $region24: #{tpu_custom_call.1} parent=1 // pred_region
      %285 = vsyncadd [#allocation5], 0
      %s287 = sshll.u32 [#allocation4], 4
      %s288 = int_to_ptr.vmem [resolvable:$true] %s287
      %s289 = sshll.u32 %s5, 4
      %s290 = int_to_ptr.hbm [resolvable:$true] %s289
      %292 = dma.vmem_to_hbm [thread:$0]  %s288, 128, %s290, [#allocation5]
    $region25: #{tpu_custom_call.1} parent=1 // pred_fallthru
      _
    // Predicated region
    $region26: #{tpu_custom_call.1} parent=1 // pred_check
      _
    $region27: #{tpu_custom_call.1} parent=1 // pred_check_branch
      %294 = sbr.rel (0) target = $region29
    $region28: #{tpu_custom_call.1} parent=1 // pred_region
      %296 = dma.done [#allocation3], 128
    $region29: #{tpu_custom_call.1} parent=1 // pred_fallthru
      _
    // Predicated region
    $region30: #{tpu_custom_call.1} parent=1 // pred_check
      _
    $region31: #{tpu_custom_call.1} parent=1 // pred_check_branch
      %298 = sbr.rel (0) target = $region33
    $region32: #{tpu_custom_call.1} parent=1 // pred_region
      %300 = dma.done [#allocation5], 128
    $region33: #{tpu_custom_call.1} parent=1 // pred_fallthru
      _
    %301 = vsyncpa [#allocation3], 1
    %302 = vsyncpa [#allocation5], 1

</llo_original>
